<compile_context>
chip_gen: v7x
topology: tpu7x:2x2x1
jax: 0.10.0
libtpu: 0.0.40
codegen_flags: <defaults>
</compile_context>

<pallas_src>
import jax
import jax.numpy as jnp
from jax.experimental import pallas as pl


# ----------------------------- model config ---------------------------------
N_CLASSES = 10
INPUT_DIM = 256            # = 16 * 16, flattened by x.view(-1, input_dim)
HIDDEN_DIMS = [128, 64]
LATENT_DIM = 32
BATCH = 8

D, H1, H2, L = INPUT_DIM, HIDDEN_DIMS[0], HIDDEN_DIMS[1], LATENT_DIM

# ------------------- packed operand layout (static constants) ---------------
# Weight slab: bf16, (W_ROWS, W_COLS); every block starts at col 0 and is
# zero-padded to a multiple of 128 columns so all slices are lane-aligned.
W_COLS = 256
R_W1, R_W2, R_WML, R_WD1, R_WD2, R_WD3 = 0, 256, 384, 512, 544, 672
W_ROWS = 800
# Bias pack: f32, (1, B_LANES); each bias padded to a 128-lane slot.
O_B1, O_B2, O_BML, O_BD1, O_BD2, O_BD3 = 0, 128, 256, 384, 512, 640
B_LANES = 896
# Packed head output width: mu (32) | logvar (32) | zeros (64) -> full 128 lanes.
HEAD_PAD = 128


# ------------------------------ Pallas kernel -------------------------------
def vae_kernel(x_ref, emb_ref, eps_ref, w_ref, b_ref, recon_ref, head_ref):
    f32 = jnp.float32
    bf16 = jnp.bfloat16

    def wslab(row, nrows, ncols):
        # Static, lane-aligned slice of the packed bf16 weight slab.
        return w_ref[pl.ds(row, nrows), pl.ds(0, ncols)]

    def bias(off, ncols):
        return b_ref[:, pl.ds(off, ncols)]             # (1, ncols) f32

    def fc_relu(a, row, nrows, ncols, boff):
        y = jnp.dot(a.astype(bf16), wslab(row, nrows, ncols),
                    preferred_element_type=f32) + bias(boff, ncols)
        return jnp.maximum(y, 0.0)

    x = x_ref[...]                                      # (B, 256) bf16

    # encoder hidden_fc: Linear+ReLU, Linear+ReLU
    h = fc_relu(x, R_W1, D, H1, O_B1)                   # (B, 128)
    h = fc_relu(h, R_W2, H1, 128, O_B2)                 # (B, 128); cols 64: are 0

    # fused mu/logvar heads (both Linear+ReLU in the reference module)
    ml = fc_relu(h, R_WML, 128, HEAD_PAD, O_BML)        # (B, 128) = mu|logvar|0
    head_ref[...] = ml                                  # lane-dense, unmasked store

    mu = ml[:, :L]
    log_var = ml[:, L:2 * L]

    # reparameterization + class-embedding add (all f32 elementwise)
    std = jnp.exp(0.5 * log_var)
    z = mu + eps_ref[...] * std + emb_ref[...]          # (B, 32)

    # decoder MLP, final Linear + Sigmoid
    d = fc_relu(z, R_WD1, L, 128, O_BD1)                # (B, 128); cols 64: are 0
    d = fc_relu(d, R_WD2, 128, H1, O_BD2)               # (B, 128)
    logits = jnp.dot(d.astype(bf16), wslab(R_WD3, H1, D),
                     preferred_element_type=f32) + bias(O_BD3, D)
    recon_ref[...] = jax.nn.sigmoid(logits)             # (B, 256)


# ------------------------------ JAX wrapper ---------------------------------
@jax.jit
def vae_forward(x, promotes, eps, params):
    """Matches VAE.forward: returns (reconstruction, mu, log_var)."""
    B = x.shape[0]
    x2 = x.reshape(B, D).astype(jnp.bfloat16)           # x.view(-1, input_dim)
    emb = params["embedding"][promotes]                 # nn.Embedding lookup (glue)

    recon, head = pl.pallas_call(
        vae_kernel,
        out_shape=(
            jax.ShapeDtypeStruct((B, D), jnp.float32),          # reconstruction
            jax.ShapeDtypeStruct((B, HEAD_PAD), jnp.float32),   # mu|logvar|pad
        ),
    )(x2, emb, eps, params["w_slab"], params["b_pack"])

    mu = head[:, :L]
    log_var = head[:, L:2 * L]
    return recon, mu, log_var


# --------------------------- parameter init / packing -----------------------
def init_raw_params(key):
    """Per-layer params stored as (in, out) so y = x @ W + b  (== torch x @ W.T + b)."""
    def linear(k, fan_in, fan_out):
        kw, kb = jax.random.split(k)
        bound = 1.0 / jnp.sqrt(fan_in)
        w_ = jax.random.uniform(kw, (fan_in, fan_out), jnp.float32, -bound, bound)
        b_ = jax.random.uniform(kb, (1, fan_out), jnp.float32, -bound, bound)
        return w_, b_

    keys = jax.random.split(key, 8)
    raw = {"embedding": jax.random.normal(keys[0], (N_CLASSES, L), jnp.float32)}
    raw["w1"], raw["b1"] = linear(keys[1], D, H1)
    raw["w2"], raw["b2"] = linear(keys[2], H1, H2)
    raw["wmu"], raw["bmu"] = linear(keys[3], H2, L)
    raw["wlv"], raw["blv"] = linear(keys[4], H2, L)
    raw["wd1"], raw["bd1"] = linear(keys[5], L, H2)      # decoder: latent -> hidden[::-1]
    raw["wd2"], raw["bd2"] = linear(keys[6], H2, H1)
    raw["wd3"], raw["bd3"] = linear(keys[7], H1, D)      # final Linear before Sigmoid
    return raw


def pack_params(raw):
    """One-time offline packing: bf16 weight slab + f32 bias vector."""
    wml = jnp.concatenate([raw["wmu"], raw["wlv"]], axis=1)   # (H2, 2L) fused head
    bml = jnp.concatenate([raw["bmu"], raw["blv"]], axis=1)   # (1, 2L)

    slab = jnp.zeros((W_ROWS, W_COLS), jnp.float32)
    for row, w_ in ((R_W1, raw["w1"]), (R_W2, raw["w2"]), (R_WML, wml),
                    (R_WD1, raw["wd1"]), (R_WD2, raw["wd2"]), (R_WD3, raw["wd3"])):
        r, c = w_.shape
        slab = slab.at[row:row + r, :c].set(w_)

    bpack = jnp.zeros((1, B_LANES), jnp.float32)
    for off, b_ in ((O_B1, raw["b1"]), (O_B2, raw["b2"]), (O_BML, bml),
                    (O_BD1, raw["bd1"]), (O_BD2, raw["bd2"]), (O_BD3, raw["bd3"])):
        bpack = bpack.at[:, off:off + b_.shape[1]].set(b_)

    return dict(embedding=raw["embedding"],
                w_slab=slab.astype(jnp.bfloat16),
                b_pack=bpack)


# ------------------------------ pure-JAX reference ---------------------------
def vae_reference(x, promotes, eps, raw):
    relu = lambda a: jnp.maximum(a, 0.0)
    x2 = x.reshape(x.shape[0], D)
    h = relu(x2 @ raw["w1"] + raw["b1"])
    h = relu(h @ raw["w2"] + raw["b2"])
    mu = relu(h @ raw["wmu"] + raw["bmu"])
    log_var = relu(h @ raw["wlv"] + raw["blv"])
    noise = mu + eps * jnp.exp(0.5 * log_var)
    z = noise + raw["embedding"][promotes]
    d = relu(z @ raw["wd1"] + raw["bd1"])
    d = relu(d @ raw["wd2"] + raw["bd2"])
    return jax.nn.sigmoid(d @ raw["wd3"] + raw["bd3"]), mu, log_var


# ---------------------------------- main -------------------------------------
if __name__ == "__main__":
    root = jax.random.PRNGKey(0)
    k_params, k_x, k_prom, k_eps = jax.random.split(root, 4)

    raw = init_raw_params(k_params)
    params = pack_params(raw)

    x = jax.random.normal(k_x, (BATCH, 16, 16), jnp.float32)      # -> view(-1, 256)
    promotes = jax.random.randint(k_prom, (BATCH,), 0, N_CLASSES, jnp.int32)
    # eps = torch.randn_like(std): drawn once, deterministically, in the wrapper
    eps = jax.random.normal(k_eps, (BATCH, L), jnp.float32)

    recon, mu, log_var = vae_forward(x, promotes, eps, params)
    jax.block_until_ready((recon, mu, log_var))

    assert recon.shape == (BATCH, D)
    assert mu.shape == (BATCH, L) and log_var.shape == (BATCH, L)
    assert bool(jnp.all(jnp.isfinite(recon)))
    assert bool(jnp.all((recon >= 0.0) & (recon <= 1.0)))         # sigmoid range

    # Numerical check vs f32 reference (bf16 matmul operands -> loose tolerance).
    r_ref, mu_ref, lv_ref = vae_reference(x, promotes, eps, raw)
    assert bool(jnp.max(jnp.abs(recon - r_ref)) < 5e-2)
    assert bool(jnp.max(jnp.abs(mu - mu_ref)) < 5e-2)
    assert bool(jnp.max(jnp.abs(log_var - lv_ref)) < 5e-2)

    print("KERNEL_OK")
</pallas_src>

<mosaic_0001>
module attributes {stable_mosaic.version = 11 : i64} {
  func.func @vae_kernel(%arg0: memref<8x256xbf16, #tpu.memory_space<vmem>>, %arg1: memref<8x32xf32, #tpu.memory_space<vmem>>, %arg2: memref<8x32xf32, #tpu.memory_space<vmem>>, %arg3: memref<800x256xbf16, #tpu.memory_space<vmem>>, %arg4: memref<1x896xf32, #tpu.memory_space<vmem>>, %arg5: memref<8x256xf32, #tpu.memory_space<vmem>>, %arg6: memref<8x128xf32, #tpu.memory_space<vmem>>) attributes {dimension_semantics = [], scalar_prefetch = 0 : i64, scratch_operands = 0 : i64, tpu.core_type = #tpu.core_type<tc>} {
    %c0 = arith.constant 0 : index
    %c0_0 = arith.constant 0 : index
    %0 = vector.load %arg0[%c0, %c0_0] : memref<8x256xbf16, #tpu.memory_space<vmem>>, vector<8x256xbf16>
    %c0_1 = arith.constant 0 : index
    %c0_2 = arith.constant 0 : index
    %1 = vector.load %arg3[%c0_1, %c0_2] : memref<800x256xbf16, #tpu.memory_space<vmem>>, vector<256x128xbf16>
    %cst = arith.constant dense<0.000000e+00> : vector<8x128xf32>
    %2 = tpu.matmul %0, %1, %cst {dimension_numbers = #tpu.dot_dimension_numbers<[1], [0], [0], [1], [0, 0, 1, 1], [], []>} : vector<8x256xbf16>, vector<256x128xbf16>, vector<8x128xf32> -> vector<8x128xf32>
    %c0_3 = arith.constant 0 : index
    %c0_4 = arith.constant 0 : index
    %3 = vector.load %arg4[%c0_3, %c0_4] : memref<1x896xf32, #tpu.memory_space<vmem>>, vector<1x128xf32>
    %4 = vector.broadcast %3 : vector<1x128xf32> to vector<8x128xf32>
    %5 = arith.addf %2, %4 : vector<8x128xf32>
    %cst_5 = arith.constant 0.000000e+00 : f32
    %6 = vector.broadcast %cst_5 : f32 to vector<8x128xf32>
    %7 = arith.maximumf %5, %6 : vector<8x128xf32>
    %8 = arith.truncf %7 : vector<8x128xf32> to vector<8x128xbf16>
    %c256 = arith.constant 256 : index
    %c0_6 = arith.constant 0 : index
    %9 = vector.load %arg3[%c256, %c0_6] : memref<800x256xbf16, #tpu.memory_space<vmem>>, vector<128x128xbf16>
    %cst_7 = arith.constant dense<0.000000e+00> : vector<8x128xf32>
    %10 = tpu.matmul %8, %9, %cst_7 {dimension_numbers = #tpu.dot_dimension_numbers<[1], [0], [0], [1], [0, 0, 1, 1], [], []>} : vector<8x128xbf16>, vector<128x128xbf16>, vector<8x128xf32> -> vector<8x128xf32>
    %c0_8 = arith.constant 0 : index
    %c128 = arith.constant 128 : index
    %11 = vector.load %arg4[%c0_8, %c128] : memref<1x896xf32, #tpu.memory_space<vmem>>, vector<1x128xf32>
    %12 = vector.broadcast %11 : vector<1x128xf32> to vector<8x128xf32>
    %13 = arith.addf %10, %12 : vector<8x128xf32>
    %cst_9 = arith.constant 0.000000e+00 : f32
    %14 = vector.broadcast %cst_9 : f32 to vector<8x128xf32>
    %15 = arith.maximumf %13, %14 : vector<8x128xf32>
    %16 = arith.truncf %15 : vector<8x128xf32> to vector<8x128xbf16>
    %c384 = arith.constant 384 : index
    %c0_10 = arith.constant 0 : index
    %17 = vector.load %arg3[%c384, %c0_10] : memref<800x256xbf16, #tpu.memory_space<vmem>>, vector<128x128xbf16>
    %cst_11 = arith.constant dense<0.000000e+00> : vector<8x128xf32>
    %18 = tpu.matmul %16, %17, %cst_11 {dimension_numbers = #tpu.dot_dimension_numbers<[1], [0], [0], [1], [0, 0, 1, 1], [], []>} : vector<8x128xbf16>, vector<128x128xbf16>, vector<8x128xf32> -> vector<8x128xf32>
    %c0_12 = arith.constant 0 : index
    %c256_13 = arith.constant 256 : index
    %19 = vector.load %arg4[%c0_12, %c256_13] : memref<1x896xf32, #tpu.memory_space<vmem>>, vector<1x128xf32>
    %20 = vector.broadcast %19 : vector<1x128xf32> to vector<8x128xf32>
    %21 = arith.addf %18, %20 : vector<8x128xf32>
    %cst_14 = arith.constant 0.000000e+00 : f32
    %22 = vector.broadcast %cst_14 : f32 to vector<8x128xf32>
    %23 = arith.maximumf %21, %22 : vector<8x128xf32>
    %c0_15 = arith.constant 0 : index
    %c0_16 = arith.constant 0 : index
    %24 = vector.load %arg6[%c0_15, %c0_16] : memref<8x128xf32, #tpu.memory_space<vmem>>, vector<8x128xf32>
    tpu.vector_store %arg6[%c0_15, %c0_16], %23 {strides = array<i32>} : memref<8x128xf32, #tpu.memory_space<vmem>>, vector<8x128xf32>,
    %25 = vector.extract_strided_slice %23 {offsets = [0, 0], sizes = [8, 32], strides = [1, 1]} : vector<8x128xf32> to vector<8x32xf32>
    %26 = vector.extract_strided_slice %23 {offsets = [0, 32], sizes = [8, 32], strides = [1, 1]} : vector<8x128xf32> to vector<8x32xf32>
    %cst_17 = arith.constant 5.000000e-01 : f32
    %27 = vector.broadcast %cst_17 : f32 to vector<8x32xf32>
    %28 = arith.mulf %27, %26 : vector<8x32xf32>
    %29 = math.exp %28 : vector<8x32xf32>
    %c0_18 = arith.constant 0 : index
    %c0_19 = arith.constant 0 : index
    %30 = vector.load %arg2[%c0_18, %c0_19] : memref<8x32xf32, #tpu.memory_space<vmem>>, vector<8x32xf32>
    %31 = arith.mulf %30, %29 : vector<8x32xf32>
    %32 = arith.addf %25, %31 : vector<8x32xf32>
    %c0_20 = arith.constant 0 : index
    %c0_21 = arith.constant 0 : index
    %33 = vector.load %arg1[%c0_20, %c0_21] : memref<8x32xf32, #tpu.memory_space<vmem>>, vector<8x32xf32>
    %34 = arith.addf %32, %33 : vector<8x32xf32>
    %35 = arith.truncf %34 : vector<8x32xf32> to vector<8x32xbf16>
    %c512 = arith.constant 512 : index
    %c0_22 = arith.constant 0 : index
    %36 = vector.load %arg3[%c512, %c0_22] : memref<800x256xbf16, #tpu.memory_space<vmem>>, vector<32x128xbf16>
    %cst_23 = arith.constant dense<0.000000e+00> : vector<8x128xf32>
    %37 = tpu.matmul %35, %36, %cst_23 {dimension_numbers = #tpu.dot_dimension_numbers<[1], [0], [0], [1], [0, 0, 1, 1], [], []>} : vector<8x32xbf16>, vector<32x128xbf16>, vector<8x128xf32> -> vector<8x128xf32>
    %c0_24 = arith.constant 0 : index
    %c384_25 = arith.constant 384 : index
    %38 = vector.load %arg4[%c0_24, %c384_25] : memref<1x896xf32, #tpu.memory_space<vmem>>, vector<1x128xf32>
    %39 = vector.broadcast %38 : vector<1x128xf32> to vector<8x128xf32>
    %40 = arith.addf %37, %39 : vector<8x128xf32>
    %cst_26 = arith.constant 0.000000e+00 : f32
    %41 = vector.broadcast %cst_26 : f32 to vector<8x128xf32>
    %42 = arith.maximumf %40, %41 : vector<8x128xf32>
    %43 = arith.truncf %42 : vector<8x128xf32> to vector<8x128xbf16>
    %c544 = arith.constant 544 : index
    %c0_27 = arith.constant 0 : index
    %44 = vector.load %arg3[%c544, %c0_27] : memref<800x256xbf16, #tpu.memory_space<vmem>>, vector<128x128xbf16>
    %cst_28 = arith.constant dense<0.000000e+00> : vector<8x128xf32>
    %45 = tpu.matmul %43, %44, %cst_28 {dimension_numbers = #tpu.dot_dimension_numbers<[1], [0], [0], [1], [0, 0, 1, 1], [], []>} : vector<8x128xbf16>, vector<128x128xbf16>, vector<8x128xf32> -> vector<8x128xf32>
    %c0_29 = arith.constant 0 : index
    %c512_30 = arith.constant 512 : index
    %46 = vector.load %arg4[%c0_29, %c512_30] : memref<1x896xf32, #tpu.memory_space<vmem>>, vector<1x128xf32>
    %47 = vector.broadcast %46 : vector<1x128xf32> to vector<8x128xf32>
    %48 = arith.addf %45, %47 : vector<8x128xf32>
    %cst_31 = arith.constant 0.000000e+00 : f32
    %49 = vector.broadcast %cst_31 : f32 to vector<8x128xf32>
    %50 = arith.maximumf %48, %49 : vector<8x128xf32>
    %51 = arith.truncf %50 : vector<8x128xf32> to vector<8x128xbf16>
    %c672 = arith.constant 672 : index
    %c0_32 = arith.constant 0 : index
    %52 = vector.load %arg3[%c672, %c0_32] : memref<800x256xbf16, #tpu.memory_space<vmem>>, vector<128x256xbf16>
    %cst_33 = arith.constant dense<0.000000e+00> : vector<8x256xf32>
    %53 = tpu.matmul %51, %52, %cst_33 {dimension_numbers = #tpu.dot_dimension_numbers<[1], [0], [0], [1], [0, 0, 1, 1], [], []>} : vector<8x128xbf16>, vector<128x256xbf16>, vector<8x256xf32> -> vector<8x256xf32>
    %c0_34 = arith.constant 0 : index
    %c640 = arith.constant 640 : index
    %54 = vector.load %arg4[%c0_34, %c640] : memref<1x896xf32, #tpu.memory_space<vmem>>, vector<1x256xf32>
    %55 = vector.broadcast %54 : vector<1x256xf32> to vector<8x256xf32>
    %56 = arith.addf %53, %55 : vector<8x256xf32>
    %57 = arith.negf %56 : vector<8x256xf32>
    %58 = math.exp %57 : vector<8x256xf32>
    %cst_35 = arith.constant 1.000000e+00 : f32
    %59 = vector.broadcast %cst_35 : f32 to vector<8x256xf32>
    %60 = arith.addf %59, %58 : vector<8x256xf32>
    %61 = arith.divf %59, %60 : vector<8x256xf32>
    %c0_36 = arith.constant 0 : index
    %c0_37 = arith.constant 0 : index
    %62 = vector.load %arg5[%c0_36, %c0_37] : memref<8x256xf32, #tpu.memory_space<vmem>>, vector<8x256xf32>
    tpu.vector_store %arg5[%c0_36, %c0_37], %61 {strides = array<i32>} : memref<8x256xf32, #tpu.memory_space<vmem>>, vector<8x256xf32>,
    return
  }
}

</mosaic_0001>

<llo_original>
// kernel: vae_forward.1
$region0: #{vae_forward.1}
  #allocation0 [shape = 'u32[]', space=smem, size = 0x4, offset = 0x4, fixed_abs, tag = 'smem constant byte address 0x4 - core index']
  #allocation1 [shape = 'u32[144,128]{1,0:T(1,128)}', space=vmem, size = 0x12000, scoped, tag = 'internal scratch']
  %s0 = inlined_call_operand.vmem [shape: bf16[8,256], index: 0, kind: input, shape index: {}]
  %s1 = inlined_call_operand.vmem [shape: f32[8,32], index: 1, kind: input, shape index: {}]
  %s2 = inlined_call_operand.vmem [shape: f32[8,32], index: 2, kind: input, shape index: {}]
  %s3 = inlined_call_operand.hbm [shape: bf16[800,256], index: 3, kind: input, shape index: {}]
  %s4 = inlined_call_operand.vmem [shape: f32[1,896], index: 4, kind: input, shape index: {}]
  %s5 = inlined_call_operand.hbm [shape: f32[8,256], index: 5, kind: output, shape index: {0}]
  %s6 = inlined_call_operand.vmem [shape: f32[8,128], index: 6, kind: output, shape index: {1}]
  %7 = xla_tuple %s5, %s6
  %s8 = sld [smem:[#allocation0]]
  $region42: #{vae_forward.1} parent=0
    _
  %s10 = ssub.s32 1, %s8
  %s11 = scalar_select 0, %s10, %s8
  $region1: #{vae_forward.1} parent=0
    #allocation2 [shape = 'u8[409600]{0}', space=vmem, size = 0x64000, scoped, tag = 'input window, operand 3, single buffered']
    #allocation3 [shape = 's32[1]{0}', space=sflag, size = 0x4, scoped, tag = 'scoped memory for vae_forward.1']
    #allocation4 [shape = 's32[1]{0}', space=sflag, size = 0x4, scoped, tag = 'scoped memory for vae_forward.1']
    #allocation5 [shape = 'u8[8192]{0}', space=vmem, size = 0x2000, scoped, tag = 'output window, operand 0, single buffered']
    %12 = vsyncpa [#allocation3], 0
    %13 = vsyncpa [#allocation4], 0
    // Predicated region
    $region2: #{vae_forward.1} parent=1 // pred_check
      _
    $region3: #{vae_forward.1} parent=1 // pred_check_branch
      %15 = sbr.rel (0) target = $region5
    $region4: #{vae_forward.1} parent=1 // pred_region
      _
    $region5: #{vae_forward.1} parent=1 // pred_fallthru
      _
    // Predicated region
    $region6: #{vae_forward.1} parent=1 // pred_check
      _
    $region7: #{vae_forward.1} parent=1 // pred_check_branch
      %17 = sbr.rel (0) target = $region9
    $region8: #{vae_forward.1} parent=1 // pred_region
      _
    $region9: #{vae_forward.1} parent=1 // pred_fallthru
      _
    // Predicated region
    $region10: #{vae_forward.1} parent=1 // pred_check
      _
    $region11: #{vae_forward.1} parent=1 // pred_check_branch
      %19 = sbr.rel (0) target = $region13
    $region12: #{vae_forward.1} parent=1 // pred_region
      _
    $region13: #{vae_forward.1} parent=1 // pred_fallthru
      _
    // Predicated region
    $region14: #{vae_forward.1} parent=1 // pred_check
      _
    $region15: #{vae_forward.1} parent=1 // pred_check_branch
      %21 = sbr.rel (0) target = $region17
    $region16: #{vae_forward.1} parent=1 // pred_region
      %s23 = ssub.s32 12800, 12800
      %24 = vsyncadd [#allocation3], %s23
      %s25 = sshll.u32 [#allocation2], 4
      %s26 = int_to_ptr.vmem [resolvable:$true] %s25
      %31 = dma.hbm_to_vmem [thread:$0]  %s3, 12800, %s26, [#allocation3], 128, 128, 8
    $region17: #{vae_forward.1} parent=1 // pred_fallthru
      _
    // Predicated region
    $region18: #{vae_forward.1} parent=1 // pred_check
      _
    $region19: #{vae_forward.1} parent=1 // pred_check_branch
      %33 = sbr.rel (0) target = $region21
    $region20: #{vae_forward.1} parent=1 // pred_region
      _
    $region21: #{vae_forward.1} parent=1 // pred_fallthru
      _
    // Predicated region
    $region22: #{vae_forward.1} parent=1 // pred_check
      _
    $region23: #{vae_forward.1} parent=1 // pred_check_branch
      %35 = sbr.rel (0) target = $region25
    $region24: #{vae_forward.1} parent=1 // pred_region
      %36 = dma.done [#allocation3], 12800
    $region25: #{vae_forward.1} parent=1 // pred_fallthru
      _
    %v38 = vld [vmem:[%s0] sm:$0xff]
    %v39 = vld [vmem:[#allocation2] sm:$0xf]
    %v40 = vld [vmem:[#allocation2 + $0x8] sm:$0xf]
    %v41 = vld [vmem:[#allocation2 + $0x10] sm:$0xf]
    %v42 = vld [vmem:[#allocation2 + $0x18] sm:$0xf]
    %v43 = vld [vmem:[#allocation2 + $0x20] sm:$0xf]
    %v44 = vld [vmem:[#allocation2 + $0x28] sm:$0xf]
    %v45 = vld [vmem:[#allocation2 + $0x30] sm:$0xf]
    %v46 = vld [vmem:[#allocation2 + $0x38] sm:$0xf]
    %v47 = vld [vmem:[#allocation2 + $0x40] sm:$0xf]
    %v48 = vld [vmem:[#allocation2 + $0x48] sm:$0xf]
    %v49 = vld [vmem:[#allocation2 + $0x50] sm:$0xf]
    %v50 = vld [vmem:[#allocation2 + $0x58] sm:$0xf]
    %v51 = vld [vmem:[#allocation2 + $0x60] sm:$0xf]
    %v52 = vld [vmem:[#allocation2 + $0x68] sm:$0xf]
    %v53 = vld [vmem:[#allocation2 + $0x70] sm:$0xf]
    %v54 = vld [vmem:[#allocation2 + $0x78] sm:$0xf]
    %v55 = vld [vmem:[#allocation2 + $0x80] sm:$0xf]
    %v56 = vld [vmem:[#allocation2 + $0x88] sm:$0xf]
    %v57 = vld [vmem:[#allocation2 + $0x90] sm:$0xf]
    %v58 = vld [vmem:[#allocation2 + $0x98] sm:$0xf]
    %v59 = vld [vmem:[#allocation2 + $0xa0] sm:$0xf]
    %v60 = vld [vmem:[#allocation2 + $0xa8] sm:$0xf]
    %v61 = vld [vmem:[#allocation2 + $0xb0] sm:$0xf]
    %v62 = vld [vmem:[#allocation2 + $0xb8] sm:$0xf]
    %v63 = vld [vmem:[#allocation2 + $0xc0] sm:$0xf]
    %v64 = vld [vmem:[#allocation2 + $0xc8] sm:$0xf]
    %v65 = vld [vmem:[#allocation2 + $0xd0] sm:$0xf]
    %v66 = vld [vmem:[#allocation2 + $0xd8] sm:$0xf]
    %v67 = vld [vmem:[#allocation2 + $0xe0] sm:$0xf]
    %v68 = vld [vmem:[#allocation2 + $0xe8] sm:$0xf]
    %v69 = vld [vmem:[#allocation2 + $0xf0] sm:$0xf]
    %v70 = vld [vmem:[#allocation2 + $0xf8] sm:$0xf]
    %v71 = vld [vmem:[%s4] sm:$0x1]
    %v73 = vlaneseq
    %v74 = vshrl.u32 %v73, 7
    %v75 = vsub.s32 0, %v74
    %v76 = vrot.slane %v71, %v75
    %v79 = vunpack.c.l.b16 %v38
    %v80 = vunpack.c.h.b16 %v38
    %v81 = vpack.c.b16 %v79, %v79
    %v82 = vpack.c.b16 %v80, %v80
    %v117 = vunpack.c.l.b16 %v39
    %v118 = vunpack.c.l.b16 %v40
    %v119 = vunpack.c.l.b16 %v41
    %v120 = vunpack.c.l.b16 %v42
    %v121 = vunpack.c.l.b16 %v43
    %v122 = vunpack.c.l.b16 %v44
    %v123 = vunpack.c.l.b16 %v45
    %v124 = vunpack.c.l.b16 %v46
    %v125 = vunpack.c.l.b16 %v47
    %v126 = vunpack.c.l.b16 %v48
    %v127 = vunpack.c.l.b16 %v49
    %v128 = vunpack.c.l.b16 %v50
    %v129 = vunpack.c.l.b16 %v51
    %v130 = vunpack.c.l.b16 %v52
    %v131 = vunpack.c.l.b16 %v53
    %v132 = vunpack.c.l.b16 %v54
    %v133 = vunpack.c.l.b16 %v55
    %v134 = vunpack.c.l.b16 %v56
    %v135 = vunpack.c.l.b16 %v57
    %v136 = vunpack.c.l.b16 %v58
    %v137 = vunpack.c.l.b16 %v59
    %v138 = vunpack.c.l.b16 %v60
    %v139 = vunpack.c.l.b16 %v61
    %v140 = vunpack.c.l.b16 %v62
    %v141 = vunpack.c.l.b16 %v63
    %v142 = vunpack.c.l.b16 %v64
    %v143 = vunpack.c.l.b16 %v65
    %v144 = vunpack.c.l.b16 %v66
    %v145 = vunpack.c.l.b16 %v67
    %v146 = vunpack.c.l.b16 %v68
    %v147 = vunpack.c.l.b16 %v69
    %v148 = vunpack.c.l.b16 %v70
    %v149 = vpack.c.b16 %v118, %v117
    %v150 = vpack.c.b16 %v120, %v119
    %v151 = vpack.c.b16 %v122, %v121
    %v152 = vpack.c.b16 %v124, %v123
    %v153 = vpack.c.b16 %v126, %v125
    %v154 = vpack.c.b16 %v128, %v127
    %v155 = vpack.c.b16 %v130, %v129
    %v156 = vpack.c.b16 %v132, %v131
    %v157 = vpack.c.b16 %v134, %v133
    %v158 = vpack.c.b16 %v136, %v135
    %v159 = vpack.c.b16 %v138, %v137
    %v160 = vpack.c.b16 %v140, %v139
    %v161 = vpack.c.b16 %v142, %v141
    %v162 = vpack.c.b16 %v144, %v143
    %v163 = vpack.c.b16 %v146, %v145
    %v164 = vpack.c.b16 %v148, %v147
    %181 = vmatprep.subr.bf16.mxu0 0
    %182 = vmatpush1.bf16.msra.mxu0 %v149
    %183 = vmatprep.subr.bf16.mxu0 0
    %184 = vmatpush1.bf16.msra.mxu0 %v150
    %185 = vmatprep.subr.bf16.mxu0 0
    %186 = vmatpush1.bf16.msra.mxu0 %v151
    %187 = vmatprep.subr.bf16.mxu0 0
    %188 = vmatpush1.bf16.msra.mxu0 %v152
    %189 = vmatprep.subr.bf16.mxu0 0
    %190 = vmatpush1.bf16.msra.mxu0 %v153
    %191 = vmatprep.subr.bf16.mxu0 0
    %192 = vmatpush1.bf16.msra.mxu0 %v154
    %193 = vmatprep.subr.bf16.mxu0 0
    %194 = vmatpush1.bf16.msra.mxu0 %v155
    %195 = vmatprep.subr.bf16.mxu0 0
    %196 = vmatpush1.bf16.msra.mxu0 %v156
    %197 = vmatprep.subr.bf16.mxu0 0
    %198 = vmatpush1.bf16.msra.mxu0 %v157
    %199 = vmatprep.subr.bf16.mxu0 0
    %200 = vmatpush1.bf16.msra.mxu0 %v158
    %201 = vmatprep.subr.bf16.mxu0 0
    %202 = vmatpush1.bf16.msra.mxu0 %v159
    %203 = vmatprep.subr.bf16.mxu0 0
    %204 = vmatpush1.bf16.msra.mxu0 %v160
    %205 = vmatprep.subr.bf16.mxu0 0
    %206 = vmatpush1.bf16.msra.mxu0 %v161
    %207 = vmatprep.subr.bf16.mxu0 0
    %208 = vmatpush1.bf16.msra.mxu0 %v162
    %209 = vmatprep.subr.bf16.mxu0 0
    %210 = vmatpush1.bf16.msra.mxu0 %v163
    %211 = vmatprep.subr.bf16.mxu0 0
    %212 = vmatpush1.bf16.msra.mxu0 %v164
    %213 = vmatprep.mubr.bf16.mxu0 %v82
    %214 = vmatmul.mubr.bf16.gmra.mrb[0].mxu0 %v81
    %v215 = vpop.f32.mrb[0].mxu0
    %v216 = vadd.f32 %v76, %v215
    %v217 = vpop.f32.mrb[0].mxu0
    %v218 = vpop.f32.mrb[0].mxu0
    %v219 = vpop.f32.mrb[0].mxu0
    %220 = vdwg.mxu0
    %v221 = vmax.f32 %v216, 0.0
    %v222 = vpack.c.bf16 %v221, %v221
    %v223 = vld [vmem:[#allocation2 + $0x100] sm:$0xf]
    %v224 = vld [vmem:[#allocation2 + $0x108] sm:$0xf]
    %v225 = vld [vmem:[#allocation2 + $0x110] sm:$0xf]
    %v226 = vld [vmem:[#allocation2 + $0x118] sm:$0xf]
    %v227 = vld [vmem:[#allocation2 + $0x120] sm:$0xf]
    %v228 = vld [vmem:[#allocation2 + $0x128] sm:$0xf]
    %v229 = vld [vmem:[#allocation2 + $0x130] sm:$0xf]
    %v230 = vld [vmem:[#allocation2 + $0x138] sm:$0xf]
    %v231 = vld [vmem:[#allocation2 + $0x140] sm:$0xf]
    %v232 = vld [vmem:[#allocation2 + $0x148] sm:$0xf]
    %v233 = vld [vmem:[#allocation2 + $0x150] sm:$0xf]
    %v234 = vld [vmem:[#allocation2 + $0x158] sm:$0xf]
    %v235 = vld [vmem:[#allocation2 + $0x160] sm:$0xf]
    %v236 = vld [vmem:[#allocation2 + $0x168] sm:$0xf]
    %v237 = vld [vmem:[#allocation2 + $0x170] sm:$0xf]
    %v238 = vld [vmem:[#allocation2 + $0x178] sm:$0xf]
    %v239 = vld [vmem:[%s4 + $0x1] sm:$0x1]
    %v241 = vlaneseq
    %v242 = vshrl.u32 %v241, 7
    %v243 = vsub.s32 0, %v242
    %v244 = vrot.slane %v239, %v243
    %v262 = vunpack.c.l.b16 %v223
    %v263 = vunpack.c.l.b16 %v224
    %v264 = vunpack.c.l.b16 %v225
    %v265 = vunpack.c.l.b16 %v226
    %v266 = vunpack.c.l.b16 %v227
    %v267 = vunpack.c.l.b16 %v228
    %v268 = vunpack.c.l.b16 %v229
    %v269 = vunpack.c.l.b16 %v230
    %v270 = vunpack.c.l.b16 %v231
    %v271 = vunpack.c.l.b16 %v232
    %v272 = vunpack.c.l.b16 %v233
    %v273 = vunpack.c.l.b16 %v234
    %v274 = vunpack.c.l.b16 %v235
    %v275 = vunpack.c.l.b16 %v236
    %v276 = vunpack.c.l.b16 %v237
    %v277 = vunpack.c.l.b16 %v238
    %v278 = vpack.c.b16 %v263, %v262
    %v279 = vpack.c.b16 %v265, %v264
    %v280 = vpack.c.b16 %v267, %v266
    %v281 = vpack.c.b16 %v269, %v268
    %v282 = vpack.c.b16 %v271, %v270
    %v283 = vpack.c.b16 %v273, %v272
    %v284 = vpack.c.b16 %v275, %v274
    %v285 = vpack.c.b16 %v277, %v276
    %294 = vmatprep.subr.bf16.mxu0 0
    %295 = vmatpush1.bf16.msra.mxu0 %v278
    %296 = vmatprep.subr.bf16.mxu0 0
    %297 = vmatpush1.bf16.msra.mxu0 %v279
    %298 = vmatprep.subr.bf16.mxu0 0
    %299 = vmatpush1.bf16.msra.mxu0 %v280
    %300 = vmatprep.subr.bf16.mxu0 0
    %301 = vmatpush1.bf16.msra.mxu0 %v281
    %302 = vmatprep.subr.bf16.mxu0 0
    %303 = vmatpush1.bf16.msra.mxu0 %v282
    %304 = vmatprep.subr.bf16.mxu0 0
    %305 = vmatpush1.bf16.msra.mxu0 %v283
    %306 = vmatprep.subr.bf16.mxu0 0
    %307 = vmatpush1.bf16.msra.mxu0 %v284
    %308 = vmatprep.subr.bf16.mxu0 0
    %309 = vmatpush1.bf16.msra.mxu0 %v285
    %310 = vmatprep.subr.bf16.mxu0 0
    %311 = vmatpush1.bf16.msra.mxu0 0
    %312 = vmatprep.subr.bf16.mxu0 0
    %313 = vmatpush1.bf16.msra.mxu0 0
    %314 = vmatprep.subr.bf16.mxu0 0
    %315 = vmatpush1.bf16.msra.mxu0 0
    %316 = vmatprep.subr.bf16.mxu0 0
    %317 = vmatpush1.bf16.msra.mxu0 0
    %318 = vmatprep.subr.bf16.mxu0 0
    %319 = vmatpush1.bf16.msra.mxu0 0
    %320 = vmatprep.subr.bf16.mxu0 0
    %321 = vmatpush1.bf16.msra.mxu0 0
    %322 = vmatprep.subr.bf16.mxu0 0
    %323 = vmatpush1.bf16.msra.mxu0 0
    %324 = vmatprep.subr.bf16.mxu0 0
    %325 = vmatpush1.bf16.msra.mxu0 0
    %326 = vmatprep.mubr.bf16.mxu0 0
    %327 = vmatmul.mubr.bf16.gmra.mrb[0].mxu0 %v222
    %v328 = vpop.f32.mrb[0].mxu0
    %v329 = vadd.f32 %v244, %v328
    %v330 = vpop.f32.mrb[0].mxu0
    %v331 = vpop.f32.mrb[0].mxu0
    %v332 = vpop.f32.mrb[0].mxu0
    %333 = vdwg.mxu0
    %v334 = vmax.f32 %v329, 0.0
    %v335 = vpack.c.bf16 %v334, %v334
    %v336 = vld [vmem:[#allocation2 + $0x180] sm:$0xf]
    %v337 = vld [vmem:[#allocation2 + $0x188] sm:$0xf]
    %v338 = vld [vmem:[#allocation2 + $0x190] sm:$0xf]
    %v339 = vld [vmem:[#allocation2 + $0x198] sm:$0xf]
    %v340 = vld [vmem:[#allocation2 + $0x1a0] sm:$0xf]
    %v341 = vld [vmem:[#allocation2 + $0x1a8] sm:$0xf]
    %v342 = vld [vmem:[#allocation2 + $0x1b0] sm:$0xf]
    %v343 = vld [vmem:[#allocation2 + $0x1b8] sm:$0xf]
    %v344 = vld [vmem:[#allocation2 + $0x1c0] sm:$0xf]
    %v345 = vld [vmem:[#allocation2 + $0x1c8] sm:$0xf]
    %v346 = vld [vmem:[#allocation2 + $0x1d0] sm:$0xf]
    %v347 = vld [vmem:[#allocation2 + $0x1d8] sm:$0xf]
    %v348 = vld [vmem:[#allocation2 + $0x1e0] sm:$0xf]
    %v349 = vld [vmem:[#allocation2 + $0x1e8] sm:$0xf]
    %v350 = vld [vmem:[#allocation2 + $0x1f0] sm:$0xf]
    %v351 = vld [vmem:[#allocation2 + $0x1f8] sm:$0xf]
    %v352 = vld [vmem:[%s4 + $0x2] sm:$0x1]
    %v354 = vlaneseq
    %v355 = vshrl.u32 %v354, 7
    %v356 = vsub.s32 0, %v355
    %v357 = vrot.slane %v352, %v356
    %v375 = vunpack.c.l.b16 %v336
    %v376 = vunpack.c.l.b16 %v337
    %v377 = vunpack.c.l.b16 %v338
    %v378 = vunpack.c.l.b16 %v339
    %v379 = vunpack.c.l.b16 %v340
    %v380 = vunpack.c.l.b16 %v341
    %v381 = vunpack.c.l.b16 %v342
    %v382 = vunpack.c.l.b16 %v343
    %v383 = vunpack.c.l.b16 %v344
    %v384 = vunpack.c.l.b16 %v345
    %v385 = vunpack.c.l.b16 %v346
    %v386 = vunpack.c.l.b16 %v347
    %v387 = vunpack.c.l.b16 %v348
    %v388 = vunpack.c.l.b16 %v349
    %v389 = vunpack.c.l.b16 %v350
    %v390 = vunpack.c.l.b16 %v351
    %v391 = vpack.c.b16 %v376, %v375
    %v392 = vpack.c.b16 %v378, %v377
    %v393 = vpack.c.b16 %v380, %v379
    %v394 = vpack.c.b16 %v382, %v381
    %v395 = vpack.c.b16 %v384, %v383
    %v396 = vpack.c.b16 %v386, %v385
    %v397 = vpack.c.b16 %v388, %v387
    %v398 = vpack.c.b16 %v390, %v389
    %407 = vmatprep.subr.bf16.mxu0 0
    %408 = vmatpush1.bf16.msra.mxu0 %v391
    %409 = vmatprep.subr.bf16.mxu0 0
    %410 = vmatpush1.bf16.msra.mxu0 %v392
    %411 = vmatprep.subr.bf16.mxu0 0
    %412 = vmatpush1.bf16.msra.mxu0 %v393
    %413 = vmatprep.subr.bf16.mxu0 0
    %414 = vmatpush1.bf16.msra.mxu0 %v394
    %415 = vmatprep.subr.bf16.mxu0 0
    %416 = vmatpush1.bf16.msra.mxu0 %v395
    %417 = vmatprep.subr.bf16.mxu0 0
    %418 = vmatpush1.bf16.msra.mxu0 %v396
    %419 = vmatprep.subr.bf16.mxu0 0
    %420 = vmatpush1.bf16.msra.mxu0 %v397
    %421 = vmatprep.subr.bf16.mxu0 0
    %422 = vmatpush1.bf16.msra.mxu0 %v398
    %423 = vmatprep.subr.bf16.mxu0 0
    %424 = vmatpush1.bf16.msra.mxu0 0
    %425 = vmatprep.subr.bf16.mxu0 0
    %426 = vmatpush1.bf16.msra.mxu0 0
    %427 = vmatprep.subr.bf16.mxu0 0
    %428 = vmatpush1.bf16.msra.mxu0 0
    %429 = vmatprep.subr.bf16.mxu0 0
    %430 = vmatpush1.bf16.msra.mxu0 0
    %431 = vmatprep.subr.bf16.mxu0 0
    %432 = vmatpush1.bf16.msra.mxu0 0
    %433 = vmatprep.subr.bf16.mxu0 0
    %434 = vmatpush1.bf16.msra.mxu0 0
    %435 = vmatprep.subr.bf16.mxu0 0
    %436 = vmatpush1.bf16.msra.mxu0 0
    %437 = vmatprep.subr.bf16.mxu0 0
    %438 = vmatpush1.bf16.msra.mxu0 0
    %439 = vmatprep.mubr.bf16.mxu0 0
    %440 = vmatmul.mubr.bf16.gmra.mrb[0].mxu0 %v335
    %v441 = vpop.f32.mrb[0].mxu0
    %v442 = vadd.f32 %v357, %v441
    %v443 = vpop.f32.mrb[0].mxu0
    %v444 = vpop.f32.mrb[0].mxu0
    %v445 = vpop.f32.mrb[0].mxu0
    %446 = vdwg.mxu0
    %v447 = vmax.f32 %v442, 0.0
    %448 = vst [vmem:[%s6] sm:$0xff] %v447
    %v449 = vmul.f32 %v447, 0.5
    %v450 = vmul.f32 %v449, 1.442695
    %v451 = vpow.pop %v450
    %v452 = vld [vmem:[%s2] sm:$0xff]
    %454 = vrot.lane.b32.xlu0 %v451, 96
    %v455 = vpop.permute.xlu0 %454
    %v457 = vmul.f32 %v452, %v455
    %v458 = vadd.f32 %v447, %v457
    %v459 = vld [vmem:[%s1] sm:$0xff]
    %v460 = vadd.f32 %v458, %v459
    %v461 = vpack.c.bf16 %v460, %v460
    %v462 = vld [vmem:[#allocation2 + $0x200] sm:$0xf]
    %v463 = vld [vmem:[#allocation2 + $0x208] sm:$0xf]
    %v464 = vld [vmem:[#allocation2 + $0x210] sm:$0xf]
    %v465 = vld [vmem:[#allocation2 + $0x218] sm:$0xf]
    %v466 = vld [vmem:[%s4 + $0x3] sm:$0x1]
    %v468 = vlaneseq
    %v469 = vshrl.u32 %v468, 7
    %v470 = vsub.s32 0, %v469
    %v471 = vrot.slane %v466, %v470
    %v477 = vunpack.c.l.b16 %v462
    %v478 = vunpack.c.l.b16 %v463
    %v479 = vunpack.c.l.b16 %v464
    %v480 = vunpack.c.l.b16 %v465
    %v481 = vpack.c.b16 %v478, %v477
    %v482 = vpack.c.b16 %v480, %v479
    %vm485 = vcmask 261120
    %v487 = vsel %vm485, %v461, 0
    %489 = vmatprep.subr.bf16.mxu0 0
    %490 = vmatpush1.bf16.msra.mxu0 %v481
    %491 = vmatprep.subr.bf16.mxu0 0
    %492 = vmatpush1.bf16.msra.mxu0 %v482
    %493 = vmatprep.subr.bf16.mxu0 0
    %494 = vmatpush1.bf16.msra.mxu0 0
    %495 = vmatprep.subr.bf16.mxu0 0
    %496 = vmatpush1.bf16.msra.mxu0 0
    %497 = vmatprep.subr.bf16.mxu0 0
    %498 = vmatpush1.bf16.msra.mxu0 0
    %499 = vmatprep.subr.bf16.mxu0 0
    %500 = vmatpush1.bf16.msra.mxu0 0
    %501 = vmatprep.subr.bf16.mxu0 0
    %502 = vmatpush1.bf16.msra.mxu0 0
    %503 = vmatprep.subr.bf16.mxu0 0
    %504 = vmatpush1.bf16.msra.mxu0 0
    %505 = vmatprep.subr.bf16.mxu0 0
    %506 = vmatpush1.bf16.msra.mxu0 0
    %507 = vmatprep.subr.bf16.mxu0 0
    %508 = vmatpush1.bf16.msra.mxu0 0
    %509 = vmatprep.subr.bf16.mxu0 0
    %510 = vmatpush1.bf16.msra.mxu0 0
    %511 = vmatprep.subr.bf16.mxu0 0
    %512 = vmatpush1.bf16.msra.mxu0 0
    %513 = vmatprep.subr.bf16.mxu0 0
    %514 = vmatpush1.bf16.msra.mxu0 0
    %515 = vmatprep.subr.bf16.mxu0 0
    %516 = vmatpush1.bf16.msra.mxu0 0
    %517 = vmatprep.subr.bf16.mxu0 0
    %518 = vmatpush1.bf16.msra.mxu0 0
    %519 = vmatprep.subr.bf16.mxu0 0
    %520 = vmatpush1.bf16.msra.mxu0 0
    %521 = vmatprep.mubr.bf16.mxu0 0
    %522 = vmatmul.mubr.bf16.gmra.mrb[0].mxu0 %v487
    %v523 = vpop.f32.mrb[0].mxu0
    %v524 = vadd.f32 %v471, %v523
    %v525 = vpop.f32.mrb[0].mxu0
    %v526 = vpop.f32.mrb[0].mxu0
    %v527 = vpop.f32.mrb[0].mxu0
    %528 = vdwg.mxu0
    %v529 = vmax.f32 %v524, 0.0
    %v530 = vpack.c.bf16 %v529, %v529
    %v531 = vld [vmem:[#allocation2 + $0x220] sm:$0xf]
    %v532 = vld [vmem:[#allocation2 + $0x228] sm:$0xf]
    %v533 = vld [vmem:[#allocation2 + $0x230] sm:$0xf]
    %v534 = vld [vmem:[#allocation2 + $0x238] sm:$0xf]
    %v535 = vld [vmem:[#allocation2 + $0x240] sm:$0xf]
    %v536 = vld [vmem:[#allocation2 + $0x248] sm:$0xf]
    %v537 = vld [vmem:[#allocation2 + $0x250] sm:$0xf]
    %v538 = vld [vmem:[#allocation2 + $0x258] sm:$0xf]
    %v539 = vld [vmem:[#allocation2 + $0x260] sm:$0xf]
    %v540 = vld [vmem:[#allocation2 + $0x268] sm:$0xf]
    %v541 = vld [vmem:[#allocation2 + $0x270] sm:$0xf]
    %v542 = vld [vmem:[#allocation2 + $0x278] sm:$0xf]
    %v543 = vld [vmem:[#allocation2 + $0x280] sm:$0xf]
    %v544 = vld [vmem:[#allocation2 + $0x288] sm:$0xf]
    %v545 = vld [vmem:[#allocation2 + $0x290] sm:$0xf]
    %v546 = vld [vmem:[#allocation2 + $0x298] sm:$0xf]
    %v547 = vld [vmem:[%s4 + $0x4] sm:$0x1]
    %v549 = vlaneseq
    %v550 = vshrl.u32 %v549, 7
    %v551 = vsub.s32 0, %v550
    %v552 = vrot.slane %v547, %v551
    %v570 = vunpack.c.l.b16 %v531
    %v571 = vunpack.c.l.b16 %v532
    %v572 = vunpack.c.l.b16 %v533
    %v573 = vunpack.c.l.b16 %v534
    %v574 = vunpack.c.l.b16 %v535
    %v575 = vunpack.c.l.b16 %v536
    %v576 = vunpack.c.l.b16 %v537
    %v577 = vunpack.c.l.b16 %v538
    %v578 = vunpack.c.l.b16 %v539
    %v579 = vunpack.c.l.b16 %v540
    %v580 = vunpack.c.l.b16 %v541
    %v581 = vunpack.c.l.b16 %v542
    %v582 = vunpack.c.l.b16 %v543
    %v583 = vunpack.c.l.b16 %v544
    %v584 = vunpack.c.l.b16 %v545
    %v585 = vunpack.c.l.b16 %v546
    %v586 = vpack.c.b16 %v571, %v570
    %v587 = vpack.c.b16 %v573, %v572
    %v588 = vpack.c.b16 %v575, %v574
    %v589 = vpack.c.b16 %v577, %v576
    %v590 = vpack.c.b16 %v579, %v578
    %v591 = vpack.c.b16 %v581, %v580
    %v592 = vpack.c.b16 %v583, %v582
    %v593 = vpack.c.b16 %v585, %v584
    %602 = vmatprep.subr.bf16.mxu0 0
    %603 = vmatpush1.bf16.msra.mxu0 %v586
    %604 = vmatprep.subr.bf16.mxu0 0
    %605 = vmatpush1.bf16.msra.mxu0 %v587
    %606 = vmatprep.subr.bf16.mxu0 0
    %607 = vmatpush1.bf16.msra.mxu0 %v588
    %608 = vmatprep.subr.bf16.mxu0 0
    %609 = vmatpush1.bf16.msra.mxu0 %v589
    %610 = vmatprep.subr.bf16.mxu0 0
    %611 = vmatpush1.bf16.msra.mxu0 %v590
    %612 = vmatprep.subr.bf16.mxu0 0
    %613 = vmatpush1.bf16.msra.mxu0 %v591
    %614 = vmatprep.subr.bf16.mxu0 0
    %615 = vmatpush1.bf16.msra.mxu0 %v592
    %616 = vmatprep.subr.bf16.mxu0 0
    %617 = vmatpush1.bf16.msra.mxu0 %v593
    %618 = vmatprep.subr.bf16.mxu0 0
    %619 = vmatpush1.bf16.msra.mxu0 0
    %620 = vmatprep.subr.bf16.mxu0 0
    %621 = vmatpush1.bf16.msra.mxu0 0
    %622 = vmatprep.subr.bf16.mxu0 0
    %623 = vmatpush1.bf16.msra.mxu0 0
    %624 = vmatprep.subr.bf16.mxu0 0
    %625 = vmatpush1.bf16.msra.mxu0 0
    %626 = vmatprep.subr.bf16.mxu0 0
    %627 = vmatpush1.bf16.msra.mxu0 0
    %628 = vmatprep.subr.bf16.mxu0 0
    %629 = vmatpush1.bf16.msra.mxu0 0
    %630 = vmatprep.subr.bf16.mxu0 0
    %631 = vmatpush1.bf16.msra.mxu0 0
    %632 = vmatprep.subr.bf16.mxu0 0
    %633 = vmatpush1.bf16.msra.mxu0 0
    %634 = vmatprep.mubr.bf16.mxu0 0
    %635 = vmatmul.mubr.bf16.gmra.mrb[0].mxu0 %v530
    %v636 = vpop.f32.mrb[0].mxu0
    %v637 = vadd.f32 %v552, %v636
    %v638 = vpop.f32.mrb[0].mxu0
    %v639 = vpop.f32.mrb[0].mxu0
    %v640 = vpop.f32.mrb[0].mxu0
    %641 = vdwg.mxu0
    %v642 = vmax.f32 %v637, 0.0
    %v643 = vpack.c.bf16 %v642, %v642
    %v644 = vld [vmem:[#allocation2 + $0x2a0] sm:$0xff]
    %v645 = vld [vmem:[#allocation2 + $0x2a8] sm:$0xff]
    %v646 = vld [vmem:[#allocation2 + $0x2b0] sm:$0xff]
    %v647 = vld [vmem:[#allocation2 + $0x2b8] sm:$0xff]
    %v648 = vld [vmem:[#allocation2 + $0x2c0] sm:$0xff]
    %v649 = vld [vmem:[#allocation2 + $0x2c8] sm:$0xff]
    %v650 = vld [vmem:[#allocation2 + $0x2d0] sm:$0xff]
    %v651 = vld [vmem:[#allocation2 + $0x2d8] sm:$0xff]
    %v652 = vld [vmem:[#allocation2 + $0x2e0] sm:$0xff]
    %v653 = vld [vmem:[#allocation2 + $0x2e8] sm:$0xff]
    %v654 = vld [vmem:[#allocation2 + $0x2f0] sm:$0xff]
    %v655 = vld [vmem:[#allocation2 + $0x2f8] sm:$0xff]
    %v656 = vld [vmem:[#allocation2 + $0x300] sm:$0xff]
    %v657 = vld [vmem:[#allocation2 + $0x308] sm:$0xff]
    %v658 = vld [vmem:[#allocation2 + $0x310] sm:$0xff]
    %v659 = vld [vmem:[#allocation2 + $0x318] sm:$0xff]
    %v660 = vld [vmem:[%s4 + $0x5] sm:$0x3]
    %v662 = vlaneseq
    %v663 = vshrl.u32 %v662, 7
    %v664 = vsub.s32 0, %v663
    %v665 = vrot.slane %v660, %v664
    %v666 = vlaneseq
    %v667 = vshrl.u32 %v666, 7
    %v668 = vsub.s32 1, %v667
    %v669 = vrot.slane %v660, %v668
    %v688 = vunpack.c.l.b16 %v644
    %v689 = vunpack.c.h.b16 %v644
    %v690 = vunpack.c.l.b16 %v645
    %v691 = vunpack.c.h.b16 %v645
    %v692 = vunpack.c.l.b16 %v646
    %v693 = vunpack.c.h.b16 %v646
    %v694 = vunpack.c.l.b16 %v647
    %v695 = vunpack.c.h.b16 %v647
    %v696 = vunpack.c.l.b16 %v648
    %v697 = vunpack.c.h.b16 %v648
    %v698 = vunpack.c.l.b16 %v649
    %v699 = vunpack.c.h.b16 %v649
    %v700 = vunpack.c.l.b16 %v650
    %v701 = vunpack.c.h.b16 %v650
    %v702 = vunpack.c.l.b16 %v651
    %v703 = vunpack.c.h.b16 %v651
    %v704 = vunpack.c.l.b16 %v652
    %v705 = vunpack.c.h.b16 %v652
    %v706 = vunpack.c.l.b16 %v653
    %v707 = vunpack.c.h.b16 %v653
    %v708 = vunpack.c.l.b16 %v654
    %v709 = vunpack.c.h.b16 %v654
    %v710 = vunpack.c.l.b16 %v655
    %v711 = vunpack.c.h.b16 %v655
    %v712 = vunpack.c.l.b16 %v656
    %v713 = vunpack.c.h.b16 %v656
    %v714 = vunpack.c.l.b16 %v657
    %v715 = vunpack.c.h.b16 %v657
    %v716 = vunpack.c.l.b16 %v658
    %v717 = vunpack.c.h.b16 %v658
    %v718 = vunpack.c.l.b16 %v659
    %v719 = vunpack.c.h.b16 %v659
    %v720 = vpack.c.b16 %v690, %v688
    %v721 = vpack.c.b16 %v691, %v689
    %v722 = vpack.c.b16 %v694, %v692
    %v723 = vpack.c.b16 %v695, %v693
    %v724 = vpack.c.b16 %v698, %v696
    %v725 = vpack.c.b16 %v699, %v697
    %v726 = vpack.c.b16 %v702, %v700
    %v727 = vpack.c.b16 %v703, %v701
    %v728 = vpack.c.b16 %v706, %v704
    %v729 = vpack.c.b16 %v707, %v705
    %v730 = vpack.c.b16 %v710, %v708
    %v731 = vpack.c.b16 %v711, %v709
    %v732 = vpack.c.b16 %v714, %v712
    %v733 = vpack.c.b16 %v715, %v713
    %v734 = vpack.c.b16 %v718, %v716
    %v735 = vpack.c.b16 %v719, %v717
    %752 = vmatprep.subr.bf16.mxu0 %v721
    %753 = vmatpush1.bf16.msra.mxu0 %v720
    %754 = vmatprep.subr.bf16.mxu0 %v723
    %755 = vmatpush1.bf16.msra.mxu0 %v722
    %756 = vmatprep.subr.bf16.mxu0 %v725
    %757 = vmatpush1.bf16.msra.mxu0 %v724
    %758 = vmatprep.subr.bf16.mxu0 %v727
    %759 = vmatpush1.bf16.msra.mxu0 %v726
    %760 = vmatprep.subr.bf16.mxu0 %v729
    %761 = vmatpush1.bf16.msra.mxu0 %v728
    %762 = vmatprep.subr.bf16.mxu0 %v731
    %763 = vmatpush1.bf16.msra.mxu0 %v730
    %764 = vmatprep.subr.bf16.mxu0 %v733
    %765 = vmatpush1.bf16.msra.mxu0 %v732
    %766 = vmatprep.subr.bf16.mxu0 %v735
    %767 = vmatpush1.bf16.msra.mxu0 %v734
    %768 = vmatprep.subr.bf16.mxu0 0
    %769 = vmatpush1.bf16.msra.mxu0 0
    %770 = vmatprep.subr.bf16.mxu0 0
    %771 = vmatpush1.bf16.msra.mxu0 0
    %772 = vmatprep.subr.bf16.mxu0 0
    %773 = vmatpush1.bf16.msra.mxu0 0
    %774 = vmatprep.subr.bf16.mxu0 0
    %775 = vmatpush1.bf16.msra.mxu0 0
    %776 = vmatprep.subr.bf16.mxu0 0
    %777 = vmatpush1.bf16.msra.mxu0 0
    %778 = vmatprep.subr.bf16.mxu0 0
    %779 = vmatpush1.bf16.msra.mxu0 0
    %780 = vmatprep.subr.bf16.mxu0 0
    %781 = vmatpush1.bf16.msra.mxu0 0
    %782 = vmatprep.subr.bf16.mxu0 0
    %783 = vmatpush1.bf16.msra.mxu0 0
    %784 = vmatprep.mubr.bf16.mxu0 0
    %785 = vmatmul.mubr.bf16.gmra.mrb[0].mxu0 %v643
    %v786 = vpop.f32.mrb[0].mxu0
    %v787 = vadd.f32 %v665, %v786
    %v788 = vpop.f32.mrb[0].mxu0
    %v789 = vadd.f32 %v669, %v788
    %v790 = vpop.f32.mrb[0].mxu0
    %v791 = vpop.f32.mrb[0].mxu0
    %792 = vdwg.mxu0
    %v793 = vxor.u32 %v787, 2147483648
    %v794 = vxor.u32 %v789, 2147483648
    %v795 = vmul.f32 %v793, 1.442695
    %v796 = vpow.pop %v795
    %v797 = vmul.f32 %v794, 1.442695
    %v798 = vpow.pop %v797
    %v799 = vadd.f32 %v796, 1.0
    %v800 = vadd.f32 %v798, 1.0
    %v801 = vrcp.pop %v799
    %v802 = vmul.f32 1.0, %v801
    %v803 = vrcp.pop %v800
    %v804 = vmul.f32 1.0, %v803
    %805 = vst [vmem:[#allocation5] sm:$0xff] %v802
    %806 = vst [vmem:[#allocation5 + $0x8] sm:$0xff] %v804
    // Predicated region
    $region26: #{vae_forward.1} parent=1 // pred_check
      _
    $region27: #{vae_forward.1} parent=1 // pred_check_branch
      %808 = sbr.rel (0) target = $region29
    $region28: #{vae_forward.1} parent=1 // pred_region
      %s810 = ssub.s32 256, 256
      %811 = vsyncadd [#allocation4], %s810
      %s813 = sshll.u32 [#allocation5], 4
      %s814 = int_to_ptr.vmem [resolvable:$true] %s813
      %816 = dma.vmem_to_hbm [thread:$0]  %s814, 256, %s5, [#allocation4]
    $region29: #{vae_forward.1} parent=1 // pred_fallthru
      _
    // Predicated region
    $region30: #{vae_forward.1} parent=1 // pred_check
      _
    $region31: #{vae_forward.1} parent=1 // pred_check_branch
      %818 = sbr.rel (0) target = $region33
    $region32: #{vae_forward.1} parent=1 // pred_region
      _
    $region33: #{vae_forward.1} parent=1 // pred_fallthru
      _
    // Predicated region
    $region34: #{vae_forward.1} parent=1 // pred_check
      _
    $region35: #{vae_forward.1} parent=1 // pred_check_branch
      %820 = sbr.rel (0) target = $region37
    $region36: #{vae_forward.1} parent=1 // pred_region
      %821 = dma.done [#allocation4], 256
    $region37: #{vae_forward.1} parent=1 // pred_fallthru
      _
    // Predicated region
    $region38: #{vae_forward.1} parent=1 // pred_check
      _
    $region39: #{vae_forward.1} parent=1 // pred_check_branch
      %823 = sbr.rel (0) target = $region41
    $region40: #{vae_forward.1} parent=1 // pred_region
      _
    $region41: #{vae_forward.1} parent=1 // pred_fallthru
      _
    %824 = vsyncpa [#allocation3], 1
    %825 = vsyncpa [#allocation4], 1

</llo_original>
